<compile_context>
chip_gen: v6e
topology: v6e:2x2x1
jax: 0.10.0
libtpu: 0.0.40
codegen_flags: <defaults>
</compile_context>

<pallas_src>
import numpy as np
import jax
import jax.numpy as jnp
from jax.experimental import pallas as pl
from jax.experimental.pallas import tpu as pltpu

INPUT_DIM = 124
HIDDEN = 128
K = 10
OUT = K * K          # 100
OUT_PAD = 128        # lane-dense padded output width
EPS = 1e-5           # PyTorch BatchNorm default eps


def fcnn_kernel(x_ref, w1_ref, b1_ref, w2_ref, b2_ref, out_ref):
    tb = x_ref.shape[0]

    # x tile, cast to bf16 for native-rate MXU (f32 accumulation below).
    x = x_ref[...].astype(jnp.bfloat16)                              # (TB, 124)

    # fc1 (+ folded bn1) + ReLU.  Dropout(0.5) is identity in eval mode.
    h = jnp.dot(x, w1_ref[...], preferred_element_type=jnp.float32) + b1_ref[...]
    h = jnp.maximum(h, 0.0).astype(jnp.bfloat16)                     # (TB, 128)

    # fc2_bayes (+ folded bn2); valid logits live in lanes 0..99 (pad cols are 0).
    logits = jnp.dot(h, w2_ref[...], preferred_element_type=jnp.float32) + b2_ref[...]

    # softmax over K groups of K logits (== reshape(B, K, K); softmax(dim=2)).
    l = logits[:, :OUT].reshape(tb, K, K)
    m = jnp.max(l, axis=-1, keepdims=True)
    e = jnp.exp(l - m)
    s = jnp.sum(e, axis=-1, keepdims=True)
    p = (e * pl.reciprocal(s, approx=True)).reshape(tb, OUT)         # (TB, 100)

    # lane-dense store: probs in lanes 0..99, zeros in the padded lanes.
    out_ref[...] = jnp.concatenate(
        [p, jnp.zeros((tb, OUT_PAD - OUT), jnp.float32)], axis=-1)   # (TB, 128)


def init_raw_params(key):
    """PyTorch-default init of the module's parameters / running stats."""
    k1, k2, k3, k4 = jax.random.split(key, 4)
    s1 = 1.0 / np.sqrt(INPUT_DIM)
    s2 = 1.0 / np.sqrt(HIDDEN)
    return {
        "w1": jax.random.uniform(k1, (HIDDEN, INPUT_DIM), jnp.float32, -s1, s1),
        "b1": jax.random.uniform(k2, (HIDDEN,), jnp.float32, -s1, s1),
        "w2": jax.random.uniform(k3, (OUT, HIDDEN), jnp.float32, -s2, s2),
        "b2": jax.random.uniform(k4, (OUT,), jnp.float32, -s2, s2),
        # BatchNorm running stats at module init (affine=False: no gamma/beta)
        "rm1": jnp.zeros((INPUT_DIM,), jnp.float32),
        "rv1": jnp.ones((INPUT_DIM,), jnp.float32),
        "rm2": jnp.zeros((HIDDEN,), jnp.float32),
        "rv2": jnp.ones((HIDDEN,), jnp.float32),
    }


def fold_params(raw):
    """Fold eval-mode BatchNorms into the linears, pad fc2 to 128 cols, cast to bf16."""
    inv1 = 1.0 / jnp.sqrt(raw["rv1"] + EPS)                       # (124,)
    w1t = raw["w1"].T * inv1[:, None]                             # (124, 128)
    b1 = raw["b1"] - (raw["rm1"] * inv1) @ raw["w1"].T            # (128,)

    inv2 = 1.0 / jnp.sqrt(raw["rv2"] + EPS)                       # (128,)
    w2t = raw["w2"].T * inv2[:, None]                             # (128, 100)
    b2 = raw["b2"] - (raw["rm2"] * inv2) @ raw["w2"].T            # (100,)

    # pad fc2 output dim 100 -> 128 once at init (zero columns / zero bias)
    w2p = jnp.zeros((HIDDEN, OUT_PAD), jnp.float32).at[:, :OUT].set(w2t)
    b2p = jnp.zeros((1, OUT_PAD), jnp.float32).at[:, :OUT].set(b2)

    return {
        "w1": w1t.astype(jnp.bfloat16),          # (124, 128) bf16
        "b1": b1.reshape(1, HIDDEN),             # (1, 128)  f32
        "w2": w2p.astype(jnp.bfloat16),          # (128, 128) bf16
        "b2": b2p,                               # (1, 128)  f32
    }


def _round_up(n, m):
    return (n + m - 1) // m * m


def fcnn_batchnorm_f(x, params, *, tile_b=1024):
    B = x.shape[0]
    x2 = x.reshape(B, INPUT_DIM)

    tb = min(tile_b, _round_up(B, 8))
    b_pad = _round_up(B, tb)
    if b_pad != B:
        x2 = jnp.pad(x2, ((0, b_pad - B), (0, 0)))

    out = pl.pallas_call(
        fcnn_kernel,
        grid=(b_pad // tb,),
        in_specs=[
            pl.BlockSpec((tb, INPUT_DIM), lambda i: (i, 0)),      # x tile (streamed)
            pl.BlockSpec((INPUT_DIM, HIDDEN), lambda i: (0, 0)),  # w1 (VMEM-resident)
            pl.BlockSpec((1, HIDDEN), lambda i: (0, 0)),          # b1
            pl.BlockSpec((HIDDEN, OUT_PAD), lambda i: (0, 0)),    # w2
            pl.BlockSpec((1, OUT_PAD), lambda i: (0, 0)),         # b2
        ],
        out_specs=pl.BlockSpec((tb, OUT_PAD), lambda i: (i, 0)),
        out_shape=jax.ShapeDtypeStruct((b_pad, OUT_PAD), jnp.float32),
        compiler_params=pltpu.CompilerParams(
            dimension_semantics=("parallel",),
            vmem_limit_bytes=32 * 1024 * 1024,
        ),
    )(x2, params["w1"], params["b1"], params["w2"], params["b2"])

    return out[:B, :OUT].reshape(B, K, K)


def reference(x, raw):
    """Pure-JAX f32 eval-mode reference of the PyTorch module."""
    B = x.shape[0]
    xr = x.reshape(B, INPUT_DIM).astype(jnp.float32)
    xn = (xr - raw["rm1"]) / jnp.sqrt(raw["rv1"] + EPS)
    h = jnp.maximum(xn @ raw["w1"].T + raw["b1"], 0.0)
    hn = (h - raw["rm2"]) / jnp.sqrt(raw["rv2"] + EPS)
    logits = hn @ raw["w2"].T + raw["b2"]
    return jax.nn.softmax(logits.reshape(B, K, K), axis=-1)


if __name__ == "__main__":
    key = jax.random.PRNGKey(0)
    kx, kp = jax.random.split(key)

    # input is reshaped inside forward to (B, 124); feed it as (B, 4, 31)
    x = jax.random.normal(kx, (8, 4, 31), jnp.float32)
    raw = init_raw_params(kp)
    params = fold_params(raw)

    out = jax.block_until_ready(fcnn_batchnorm_f(x, params))
    assert out.shape == (8, K, K)

    ref = reference(x, raw)
    # bf16 MXU operands + approx reciprocal -> slightly looser tolerance vs f32 ref
    np.testing.assert_allclose(np.asarray(out), np.asarray(ref), atol=2e-2, rtol=2e-2)
    # softmax rows should sum to ~1 (approx reciprocal has ~1e-3 relative error)
    np.testing.assert_allclose(np.asarray(out).sum(-1), 1.0, atol=1e-2)

    print("KERNEL_OK")
</pallas_src>

<mosaic_0001>
module attributes {stable_mosaic.version = 11 : i64} {
  func.func @fcnn_kernel(%arg0: i32, %arg1: memref<8x124xf32, #tpu.memory_space<vmem>>, %arg2: memref<124x128xbf16, #tpu.memory_space<vmem>>, %arg3: memref<1x128xf32, #tpu.memory_space<vmem>>, %arg4: memref<128x128xbf16, #tpu.memory_space<vmem>>, %arg5: memref<1x128xf32, #tpu.memory_space<vmem>>, %arg6: memref<8x128xf32, #tpu.memory_space<vmem>>) attributes {dimension_semantics = [#tpu.dimension_semantics<parallel>], iteration_bounds = array<i64: 1>, scalar_prefetch = 0 : i64, scratch_operands = 0 : i64, tpu.core_type = #tpu.core_type<tc>, window_params = [{transform_indices = @transform_0, window_bounds = array<i64: 8, 124>}, {pipeline_mode = #tpu.pipeline_mode<synchronous>, transform_indices = @transform_1, window_bounds = array<i64: 124, 128>}, {pipeline_mode = #tpu.pipeline_mode<synchronous>, transform_indices = @transform_2, window_bounds = array<i64: 1, 128>}, {pipeline_mode = #tpu.pipeline_mode<synchronous>, transform_indices = @transform_3, window_bounds = array<i64: 128, 128>}, {pipeline_mode = #tpu.pipeline_mode<synchronous>, transform_indices = @transform_4, window_bounds = array<i64: 1, 128>}, {transform_indices = @transform_5, window_bounds = array<i64: 8, 128>}]} {
    %c0 = arith.constant 0 : index
    %c0_0 = arith.constant 0 : index
    %0 = vector.load %arg1[%c0, %c0_0] : memref<8x124xf32, #tpu.memory_space<vmem>>, vector<8x124xf32>
    %1 = arith.truncf %0 : vector<8x124xf32> to vector<8x124xbf16>
    %c0_1 = arith.constant 0 : index
    %c0_2 = arith.constant 0 : index
    %2 = vector.load %arg2[%c0_1, %c0_2] : memref<124x128xbf16, #tpu.memory_space<vmem>>, vector<124x128xbf16>
    %cst = arith.constant dense<0.000000e+00> : vector<8x128xf32>
    %3 = tpu.matmul %1, %2, %cst {dimension_numbers = #tpu.dot_dimension_numbers<[1], [0], [0], [1], [0, 0, 1, 1], [], []>} : vector<8x124xbf16>, vector<124x128xbf16>, vector<8x128xf32> -> vector<8x128xf32>
    %c0_3 = arith.constant 0 : index
    %c0_4 = arith.constant 0 : index
    %4 = vector.load %arg3[%c0_3, %c0_4] : memref<1x128xf32, #tpu.memory_space<vmem>>, vector<1x128xf32>
    %5 = vector.broadcast %4 : vector<1x128xf32> to vector<8x128xf32>
    %6 = arith.addf %3, %5 : vector<8x128xf32>
    %cst_5 = arith.constant 0.000000e+00 : f32
    %7 = vector.broadcast %cst_5 : f32 to vector<8x128xf32>
    %8 = arith.maximumf %6, %7 : vector<8x128xf32>
    %9 = arith.truncf %8 : vector<8x128xf32> to vector<8x128xbf16>
    %c0_6 = arith.constant 0 : index
    %c0_7 = arith.constant 0 : index
    %10 = vector.load %arg4[%c0_6, %c0_7] : memref<128x128xbf16, #tpu.memory_space<vmem>>, vector<128x128xbf16>
    %cst_8 = arith.constant dense<0.000000e+00> : vector<8x128xf32>
    %11 = tpu.matmul %9, %10, %cst_8 {dimension_numbers = #tpu.dot_dimension_numbers<[1], [0], [0], [1], [0, 0, 1, 1], [], []>} : vector<8x128xbf16>, vector<128x128xbf16>, vector<8x128xf32> -> vector<8x128xf32>
    %c0_9 = arith.constant 0 : index
    %c0_10 = arith.constant 0 : index
    %12 = vector.load %arg5[%c0_9, %c0_10] : memref<1x128xf32, #tpu.memory_space<vmem>>, vector<1x128xf32>
    %13 = vector.broadcast %12 : vector<1x128xf32> to vector<8x128xf32>
    %14 = arith.addf %11, %13 : vector<8x128xf32>
    %15 = vector.extract_strided_slice %14 {offsets = [0, 0], sizes = [8, 100], strides = [1, 1]} : vector<8x128xf32> to vector<8x100xf32>
    %16 = vector.shape_cast %15 : vector<8x100xf32> to vector<8x10x10xf32>
    %cst_11 = arith.constant dense<0xFF800000> : vector<8x10xf32>
    %17 = vector.multi_reduction <maximumf>, %16, %cst_11 [2] : vector<8x10x10xf32> to vector<8x10xf32>
    %18 = vector.shape_cast %17 : vector<8x10xf32> to vector<8x10x1xf32>
    %19 = vector.broadcast %18 : vector<8x10x1xf32> to vector<8x10x10xf32>
    %20 = arith.subf %16, %19 : vector<8x10x10xf32>
    %21 = math.exp %20 : vector<8x10x10xf32>
    %cst_12 = arith.constant dense<0.000000e+00> : vector<8x10xf32>
    %22 = vector.multi_reduction <add>, %21, %cst_12 [2] : vector<8x10x10xf32> to vector<8x10xf32>
    %23 = vector.shape_cast %22 : vector<8x10xf32> to vector<8x10x1xf32>
    %24 = tpu.reciprocal %23 {approx = true} : vector<8x10x1xf32> -> vector<8x10x1xf32>
    %25 = vector.broadcast %24 : vector<8x10x1xf32> to vector<8x10x10xf32>
    %26 = arith.mulf %21, %25 : vector<8x10x10xf32>
    %27 = vector.shape_cast %26 : vector<8x10x10xf32> to vector<8x100xf32>
    %cst_13 = arith.constant 0.000000e+00 : f32
    %28 = vector.broadcast %cst_13 : f32 to vector<8x28xf32>
    %29 = tpu.concatenate %27, %28 in 1 : vector<8x100xf32>, vector<8x28xf32> -> vector<8x128xf32>
    %c0_14 = arith.constant 0 : index
    %c0_15 = arith.constant 0 : index
    %30 = vector.load %arg6[%c0_14, %c0_15] : memref<8x128xf32, #tpu.memory_space<vmem>>, vector<8x128xf32>
    tpu.vector_store %arg6[%c0_14, %c0_15], %29 {strides = array<i32>} : memref<8x128xf32, #tpu.memory_space<vmem>>, vector<8x128xf32>,
    return
  }
  func.func @transform_0(%arg0: i32) -> (i32, i32) {
    %c0_i32 = arith.constant 0 : i32
    %c0_i32_0 = arith.constant 0 : i32
    return %arg0, %c0_i32 : i32, i32
  }
  func.func @transform_1(%arg0: i32) -> (i32, i32) {
    %c0_i32 = arith.constant 0 : i32
    %c0_i32_0 = arith.constant 0 : i32
    %c0_i32_1 = arith.constant 0 : i32
    return %c0_i32, %c0_i32_0 : i32, i32
  }
  func.func @transform_2(%arg0: i32) -> (i32, i32) {
    %c0_i32 = arith.constant 0 : i32
    %c0_i32_0 = arith.constant 0 : i32
    %c0_i32_1 = arith.constant 0 : i32
    return %c0_i32, %c0_i32_0 : i32, i32
  }
  func.func @transform_3(%arg0: i32) -> (i32, i32) {
    %c0_i32 = arith.constant 0 : i32
    %c0_i32_0 = arith.constant 0 : i32
    %c0_i32_1 = arith.constant 0 : i32
    return %c0_i32, %c0_i32_0 : i32, i32
  }
  func.func @transform_4(%arg0: i32) -> (i32, i32) {
    %c0_i32 = arith.constant 0 : i32
    %c0_i32_0 = arith.constant 0 : i32
    %c0_i32_1 = arith.constant 0 : i32
    return %c0_i32, %c0_i32_0 : i32, i32
  }
  func.func @transform_5(%arg0: i32) -> (i32, i32) {
    %c0_i32 = arith.constant 0 : i32
    %c0_i32_0 = arith.constant 0 : i32
    return %arg0, %c0_i32 : i32, i32
  }
}

</mosaic_0001>

<llo_original>
// kernel: tpu_custom_call.1
$region0: #{tpu_custom_call.1}
  #allocation0 [shape = 'u32[]', space=smem, size = 0x4, offset = 0x4, fixed_abs, tag = 'smem constant byte address 0x4 - core index']
  #allocation1 [shape = 'u32[144,128]{1,0:T(1,128)}', space=vmem, size = 0x12000, scoped, tag = 'internal scratch']
  %s0 = inlined_call_operand.hbm [shape: f32[8,124], index: 0, kind: input, shape index: {}]
  %s1 = inlined_call_operand.hbm [shape: bf16[124,128], index: 1, kind: input, shape index: {}]
  %s2 = inlined_call_operand.vmem [shape: f32[1,128], index: 2, kind: input, shape index: {}]
  %s3 = inlined_call_operand.hbm [shape: bf16[128,128], index: 3, kind: input, shape index: {}]
  %s4 = inlined_call_operand.vmem [shape: f32[1,128], index: 4, kind: input, shape index: {}]
  %s5 = inlined_call_operand.hbm [shape: f32[8,128], index: 5, kind: output, shape index: {}]
  %s6 = sld [smem:[#allocation0]]
  $region42: #{tpu_custom_call.1} parent=0
    _
  %s8 = ssub.s32 1, %s6
  %s9 = scalar_select 0, %s8, %s6
  $region1: #{tpu_custom_call.1} parent=0
    #allocation2 [shape = 'u8[4096]{0}', space=vmem, size = 0x1000, scoped, tag = 'input window, operand 0, single buffered']
    #allocation3 [shape = 's32[1]{0}', space=sflag, size = 0x4, scoped, tag = 'scoped memory for tpu_custom_call.1']
    #allocation4 [shape = 's32[1]{0}', space=sflag, size = 0x4, scoped, tag = 'scoped memory for tpu_custom_call.1']
    #allocation5 [shape = 'u8[32768]{0}', space=vmem, size = 0x8000, scoped, tag = 'input window, operand 1, single buffered']
    #allocation6 [shape = 's32[1]{0}', space=sflag, size = 0x4, scoped, tag = 'scoped memory for tpu_custom_call.1']
    #allocation7 [shape = 'u8[32768]{0}', space=vmem, size = 0x8000, scoped, tag = 'input window, operand 3, single buffered']
    #allocation8 [shape = 'u8[4096]{0}', space=vmem, size = 0x1000, scoped, tag = 'output window, operand 0, single buffered']
    %10 = vsyncpa [#allocation3], 0
    %11 = vsyncpa [#allocation6], 0
    %12 = vsyncpa [#allocation4], 0
    // Predicated region
    $region2: #{tpu_custom_call.1} parent=1 // pred_check
      _
    $region3: #{tpu_custom_call.1} parent=1 // pred_check_branch
      %14 = sbr.rel (0) target = $region5
    $region4: #{tpu_custom_call.1} parent=1 // pred_region
      %s16 = ssub.s32 128, 128
      %17 = vsyncadd [#allocation3], %s16
      %s19 = sshll.u32 [#allocation2], 4
      %s20 = int_to_ptr.vmem [resolvable:$true] %s19
      %22 = dma.hbm_to_vmem [thread:$0]  %s0, 128, %s20, [#allocation3]
    $region5: #{tpu_custom_call.1} parent=1 // pred_fallthru
      _
    // Predicated region
    $region6: #{tpu_custom_call.1} parent=1 // pred_check
      _
    $region7: #{tpu_custom_call.1} parent=1 // pred_check_branch
      %24 = sbr.rel (0) target = $region9
    $region8: #{tpu_custom_call.1} parent=1 // pred_region
      %s26 = ssub.s32 1024, 1024
      %27 = vsyncadd [#allocation6], %s26
      %s28 = sshll.u32 [#allocation5], 4
      %s29 = int_to_ptr.vmem [resolvable:$true] %s28
      %34 = dma.hbm_to_vmem [thread:$0]  %s1, 1024, %s29, [#allocation6], 64, 64, 4
    $region9: #{tpu_custom_call.1} parent=1 // pred_fallthru
      _
    // Predicated region
    $region10: #{tpu_custom_call.1} parent=1 // pred_check
      _
    $region11: #{tpu_custom_call.1} parent=1 // pred_check_branch
      %36 = sbr.rel (0) target = $region13
    $region12: #{tpu_custom_call.1} parent=1 // pred_region
      _
    $region13: #{tpu_custom_call.1} parent=1 // pred_fallthru
      _
    // Predicated region
    $region14: #{tpu_custom_call.1} parent=1 // pred_check
      _
    $region15: #{tpu_custom_call.1} parent=1 // pred_check_branch
      %38 = sbr.rel (0) target = $region17
    $region16: #{tpu_custom_call.1} parent=1 // pred_region
      %s40 = ssub.s32 1024, 1024
      %41 = vsyncadd [#allocation6], %s40
      %s42 = sshll.u32 [#allocation7], 4
      %s43 = int_to_ptr.vmem [resolvable:$true] %s42
      %48 = dma.hbm_to_vmem [thread:$0]  %s3, 1024, %s43, [#allocation6], 64, 64, 4
    $region17: #{tpu_custom_call.1} parent=1 // pred_fallthru
      _
    // Predicated region
    $region18: #{tpu_custom_call.1} parent=1 // pred_check
      _
    $region19: #{tpu_custom_call.1} parent=1 // pred_check_branch
      %50 = sbr.rel (0) target = $region21
    $region20: #{tpu_custom_call.1} parent=1 // pred_region
      _
    $region21: #{tpu_custom_call.1} parent=1 // pred_fallthru
      _
    // Predicated region
    $region22: #{tpu_custom_call.1} parent=1 // pred_check
      _
    $region23: #{tpu_custom_call.1} parent=1 // pred_check_branch
      %52 = sbr.rel (0) target = $region25
    $region24: #{tpu_custom_call.1} parent=1 // pred_region
      %53 = dma.done [#allocation3], 128
    $region25: #{tpu_custom_call.1} parent=1 // pred_fallthru
      _
    // Predicated region
    $region26: #{tpu_custom_call.1} parent=1 // pred_check
      _
    $region27: #{tpu_custom_call.1} parent=1 // pred_check_branch
      %55 = sbr.rel (0) target = $region29
    $region28: #{tpu_custom_call.1} parent=1 // pred_region
      %56 = dma.done [#allocation6], 1024
    $region29: #{tpu_custom_call.1} parent=1 // pred_fallthru
      _
    // Predicated region
    $region30: #{tpu_custom_call.1} parent=1 // pred_check
      _
    $region31: #{tpu_custom_call.1} parent=1 // pred_check_branch
      %58 = sbr.rel (0) target = $region33
    $region32: #{tpu_custom_call.1} parent=1 // pred_region
      %59 = dma.done [#allocation6], 1024
    $region33: #{tpu_custom_call.1} parent=1 // pred_fallthru
      _
    %v61 = vld [vmem:[#allocation2] sm:$0xff]
    %v62 = vpack.c.bf16 %v61, %v61
    %v63 = vld [vmem:[#allocation5] sm:$0xf]
    %v64 = vld [vmem:[#allocation5 + $0x4] sm:$0xf]
    %v65 = vld [vmem:[#allocation5 + $0x8] sm:$0xf]
    %v66 = vld [vmem:[#allocation5 + $0xc] sm:$0xf]
    %v67 = vld [vmem:[#allocation5 + $0x10] sm:$0xf]
    %v68 = vld [vmem:[#allocation5 + $0x14] sm:$0xf]
    %v69 = vld [vmem:[#allocation5 + $0x18] sm:$0xf]
    %v70 = vld [vmem:[#allocation5 + $0x1c] sm:$0xf]
    %v71 = vld [vmem:[#allocation5 + $0x20] sm:$0xf]
    %v72 = vld [vmem:[#allocation5 + $0x24] sm:$0xf]
    %v73 = vld [vmem:[#allocation5 + $0x28] sm:$0xf]
    %v74 = vld [vmem:[#allocation5 + $0x2c] sm:$0xf]
    %v75 = vld [vmem:[#allocation5 + $0x30] sm:$0xf]
    %v76 = vld [vmem:[#allocation5 + $0x34] sm:$0xf]
    %v77 = vld [vmem:[#allocation5 + $0x38] sm:$0xf]
    %v78 = vld [vmem:[#allocation5 + $0x3c] sm:$0x3]
    %v79 = vld [vmem:[%s2] sm:$0x1]
    %v81 = vlaneseq
    %v82 = vshrl.u32 %v81, 7
    %v83 = vsub.s32 0, %v82
    %v84 = vrot.slane %v79, %v83
    %v102 = vunpack.c.l.b16 %v63
    %v103 = vunpack.c.l.b16 %v64
    %v104 = vunpack.c.l.b16 %v65
    %v105 = vunpack.c.l.b16 %v66
    %v106 = vunpack.c.l.b16 %v67
    %v107 = vunpack.c.l.b16 %v68
    %v108 = vunpack.c.l.b16 %v69
    %v109 = vunpack.c.l.b16 %v70
    %v110 = vunpack.c.l.b16 %v71
    %v111 = vunpack.c.l.b16 %v72
    %v112 = vunpack.c.l.b16 %v73
    %v113 = vunpack.c.l.b16 %v74
    %v114 = vunpack.c.l.b16 %v75
    %v115 = vunpack.c.l.b16 %v76
    %v116 = vunpack.c.l.b16 %v77
    %v117 = vunpack.c.l.b16 %v78
    %v118 = vpack.c.b16 %v103, %v102
    %v119 = vpack.c.b16 %v105, %v104
    %v120 = vpack.c.b16 %v107, %v106
    %v121 = vpack.c.b16 %v109, %v108
    %v122 = vpack.c.b16 %v111, %v110
    %v123 = vpack.c.b16 %v113, %v112
    %v124 = vpack.c.b16 %v115, %v114
    %v125 = vpack.c.b16 %v117, %v116
    %vm133 = vcmask 1014784
    %v135 = vsel %vm133, %v62, 0
    %vm137 = vcmask 1045504
    %v139 = vsel %vm137, %v125, 0
    %141 = vmatprep.subr.bf16.mxu0 0
    %142 = vmatpush1.bf16.msra.mxu0 %v139
    %143 = vmatprep.subr.bf16.mxu0 0
    %144 = vmatpush1.bf16.msra.mxu0 %v124
    %145 = vmatprep.subr.bf16.mxu0 0
    %146 = vmatpush1.bf16.msra.mxu0 %v123
    %147 = vmatprep.subr.bf16.mxu0 0
    %148 = vmatpush1.bf16.msra.mxu0 %v122
    %149 = vmatprep.subr.bf16.mxu0 0
    %150 = vmatpush1.bf16.msra.mxu0 %v121
    %151 = vmatprep.subr.bf16.mxu0 0
    %152 = vmatpush1.bf16.msra.mxu0 %v120
    %153 = vmatprep.subr.bf16.mxu0 0
    %154 = vmatpush1.bf16.msra.mxu0 %v119
    %155 = vmatprep.subr.bf16.mxu0 0
    %156 = vmatpush1.bf16.msra.mxu0 %v118
    %157 = vmatprep.subr.bf16.mxu0 0
    %158 = vmatpush2.bf16.msra.mxu0 0
    %159 = vmatprep.subr.bf16.mxu0 0
    %160 = vmatpush2.bf16.msra.mxu0 0
    %161 = vmatprep.subr.bf16.mxu0 0
    %162 = vmatpush2.bf16.msra.mxu0 0
    %163 = vmatprep.subr.bf16.mxu0 0
    %164 = vmatpush2.bf16.msra.mxu0 0
    %165 = vmatprep.subr.bf16.mxu0 0
    %166 = vmatpush2.bf16.msra.mxu0 0
    %167 = vmatprep.subr.bf16.mxu0 0
    %168 = vmatpush2.bf16.msra.mxu0 0
    %169 = vmatprep.subr.bf16.mxu0 0
    %170 = vmatpush2.bf16.msra.mxu0 0
    %171 = vmatprep.subr.bf16.mxu0 0
    %172 = vmatpush2.bf16.msra.mxu0 0
    %173 = vmatprep.mubr.bf16.mxu0 0
    %174 = vmatmul.mubr.bf16.gmra.mxu0 %v135
    %v175 = vpop.f32.mrf.mxu0
    %v176 = vadd.f32 %v84, %v175
    %v177 = vpop.f32.mrf.mxu0
    %v178 = vpop.f32.mrf.mxu0
    %v179 = vpop.f32.mrf.mxu0
    %180 = vdwg.mxu0
    %v181 = vmax.f32 %v176, 0.0
    %v182 = vpack.c.bf16 %v181, %v181
    %v183 = vld [vmem:[#allocation7] sm:$0xf]
    %v184 = vld [vmem:[#allocation7 + $0x4] sm:$0xf]
    %v185 = vld [vmem:[#allocation7 + $0x8] sm:$0xf]
    %v186 = vld [vmem:[#allocation7 + $0xc] sm:$0xf]
    %v187 = vld [vmem:[#allocation7 + $0x10] sm:$0xf]
    %v188 = vld [vmem:[#allocation7 + $0x14] sm:$0xf]
    %v189 = vld [vmem:[#allocation7 + $0x18] sm:$0xf]
    %v190 = vld [vmem:[#allocation7 + $0x1c] sm:$0xf]
    %v191 = vld [vmem:[#allocation7 + $0x20] sm:$0xf]
    %v192 = vld [vmem:[#allocation7 + $0x24] sm:$0xf]
    %v193 = vld [vmem:[#allocation7 + $0x28] sm:$0xf]
    %v194 = vld [vmem:[#allocation7 + $0x2c] sm:$0xf]
    %v195 = vld [vmem:[#allocation7 + $0x30] sm:$0xf]
    %v196 = vld [vmem:[#allocation7 + $0x34] sm:$0xf]
    %v197 = vld [vmem:[#allocation7 + $0x38] sm:$0xf]
    %v198 = vld [vmem:[#allocation7 + $0x3c] sm:$0xf]
    %v199 = vld [vmem:[%s4] sm:$0x1]
    %v201 = vlaneseq
    %v202 = vshrl.u32 %v201, 7
    %v203 = vsub.s32 0, %v202
    %v204 = vrot.slane %v199, %v203
    %v222 = vunpack.c.l.b16 %v183
    %v223 = vunpack.c.l.b16 %v184
    %v224 = vunpack.c.l.b16 %v185
    %v225 = vunpack.c.l.b16 %v186
    %v226 = vunpack.c.l.b16 %v187
    %v227 = vunpack.c.l.b16 %v188
    %v228 = vunpack.c.l.b16 %v189
    %v229 = vunpack.c.l.b16 %v190
    %v230 = vunpack.c.l.b16 %v191
    %v231 = vunpack.c.l.b16 %v192
    %v232 = vunpack.c.l.b16 %v193
    %v233 = vunpack.c.l.b16 %v194
    %v234 = vunpack.c.l.b16 %v195
    %v235 = vunpack.c.l.b16 %v196
    %v236 = vunpack.c.l.b16 %v197
    %v237 = vunpack.c.l.b16 %v198
    %v238 = vpack.c.b16 %v223, %v222
    %v239 = vpack.c.b16 %v225, %v224
    %v240 = vpack.c.b16 %v227, %v226
    %v241 = vpack.c.b16 %v229, %v228
    %v242 = vpack.c.b16 %v231, %v230
    %v243 = vpack.c.b16 %v233, %v232
    %v244 = vpack.c.b16 %v235, %v234
    %v245 = vpack.c.b16 %v237, %v236
    %254 = vmatprep.subr.bf16.mxu0 0
    %255 = vmatpush1.bf16.msra.mxu0 %v245
    %256 = vmatprep.subr.bf16.mxu0 0
    %257 = vmatpush1.bf16.msra.mxu0 %v244
    %258 = vmatprep.subr.bf16.mxu0 0
    %259 = vmatpush1.bf16.msra.mxu0 %v243
    %260 = vmatprep.subr.bf16.mxu0 0
    %261 = vmatpush1.bf16.msra.mxu0 %v242
    %262 = vmatprep.subr.bf16.mxu0 0
    %263 = vmatpush1.bf16.msra.mxu0 %v241
    %264 = vmatprep.subr.bf16.mxu0 0
    %265 = vmatpush1.bf16.msra.mxu0 %v240
    %266 = vmatprep.subr.bf16.mxu0 0
    %267 = vmatpush1.bf16.msra.mxu0 %v239
    %268 = vmatprep.subr.bf16.mxu0 0
    %269 = vmatpush1.bf16.msra.mxu0 %v238
    %270 = vmatprep.subr.bf16.mxu0 0
    %271 = vmatpush2.bf16.msra.mxu0 0
    %272 = vmatprep.subr.bf16.mxu0 0
    %273 = vmatpush2.bf16.msra.mxu0 0
    %274 = vmatprep.subr.bf16.mxu0 0
    %275 = vmatpush2.bf16.msra.mxu0 0
    %276 = vmatprep.subr.bf16.mxu0 0
    %277 = vmatpush2.bf16.msra.mxu0 0
    %278 = vmatprep.subr.bf16.mxu0 0
    %279 = vmatpush2.bf16.msra.mxu0 0
    %280 = vmatprep.subr.bf16.mxu0 0
    %281 = vmatpush2.bf16.msra.mxu0 0
    %282 = vmatprep.subr.bf16.mxu0 0
    %283 = vmatpush2.bf16.msra.mxu0 0
    %284 = vmatprep.subr.bf16.mxu0 0
    %285 = vmatpush2.bf16.msra.mxu0 0
    %286 = vmatprep.mubr.bf16.mxu0 0
    %287 = vmatmul.mubr.bf16.gmra.mxu0 %v182
    %v288 = vpop.f32.mrf.mxu0
    %v289 = vadd.f32 %v204, %v288
    %v290 = vpop.f32.mrf.mxu0
    %v291 = vpop.f32.mrf.mxu0
    %v292 = vpop.f32.mrf.mxu0
    %293 = vdwg.mxu0
    %295 = vrot.lane.b32.xlu0 %v289, 118
    %v296 = vpop.permute.xlu0 %295
    %298 = vrot.lane.b32.xlu0 %v289, 108
    %v299 = vpop.permute.xlu0 %298
    %301 = vrot.lane.b32.xlu0 %v289, 98
    %v302 = vpop.permute.xlu0 %301
    %304 = vrot.lane.b32.xlu0 %v289, 88
    %v305 = vpop.permute.xlu0 %304
    %307 = vrot.lane.b32.xlu0 %v289, 78
    %v308 = vpop.permute.xlu0 %307
    %310 = vrot.lane.b32.xlu0 %v289, 68
    %v311 = vpop.permute.xlu0 %310
    %313 = vrot.lane.b32.xlu0 %v289, 58
    %v314 = vpop.permute.xlu0 %313
    %316 = vrot.lane.b32.xlu0 %v289, 48
    %v317 = vpop.permute.xlu0 %316
    %319 = vrot.lane.b32.xlu0 %v289, 38
    %v320 = vpop.permute.xlu0 %319
    %v322 = vcombine.low %v289, %v299
    %v323 = vcombine.high %v289, %v299
    %v325 = vunpack.c.l.s4 1983009808
    %v326 = vunpack.c.0.s8 %v325
    %v327 = vlaneseq
    %v328 = vshrl.u32 %v327, 7
    %v329 = vsub.s32 %v326, %v328
    %v330 = vrot.slane %v322, %v329
    %v332 = vunpack.c.l.s4 1983009808
    %v333 = vunpack.c.0.s8 %v332
    %v334 = vlaneseq
    %v335 = vshrl.u32 %v334, 7
    %v336 = vsub.s32 %v333, %v335
    %v337 = vrot.slane %v323, %v336
    %v338 = vcombine.low %v296, %v302
    %v339 = vcombine.high %v296, %v302
    %v341 = vunpack.c.l.s4 1983009808
    %v342 = vunpack.c.0.s8 %v341
    %v343 = vlaneseq
    %v344 = vshrl.u32 %v343, 7
    %v345 = vsub.s32 %v342, %v344
    %v346 = vrot.slane %v338, %v345
    %v348 = vunpack.c.l.s4 1983009808
    %v349 = vunpack.c.0.s8 %v348
    %v350 = vlaneseq
    %v351 = vshrl.u32 %v350, 7
    %v352 = vsub.s32 %v349, %v351
    %v353 = vrot.slane %v339, %v352
    %v354 = vcombine.low %v305, %v311
    %v355 = vcombine.high %v305, %v311
    %v357 = vunpack.c.l.s4 1983009808
    %v358 = vunpack.c.0.s8 %v357
    %v359 = vlaneseq
    %v360 = vshrl.u32 %v359, 7
    %v361 = vsub.s32 %v358, %v360
    %v362 = vrot.slane %v354, %v361
    %v364 = vunpack.c.l.s4 1983009808
    %v365 = vunpack.c.0.s8 %v364
    %v366 = vlaneseq
    %v367 = vshrl.u32 %v366, 7
    %v368 = vsub.s32 %v365, %v367
    %v369 = vrot.slane %v355, %v368
    %v370 = vcombine.low %v308, %v314
    %v371 = vcombine.high %v308, %v314
    %v373 = vunpack.c.l.s4 1983009808
    %v374 = vunpack.c.0.s8 %v373
    %v375 = vlaneseq
    %v376 = vshrl.u32 %v375, 7
    %v377 = vsub.s32 %v374, %v376
    %v378 = vrot.slane %v370, %v377
    %v380 = vunpack.c.l.s4 1983009808
    %v381 = vunpack.c.0.s8 %v380
    %v382 = vlaneseq
    %v383 = vshrl.u32 %v382, 7
    %v384 = vsub.s32 %v381, %v383
    %v385 = vrot.slane %v371, %v384
    %v386 = vcombine.low %v330, %v346
    %v387 = vcombine.high %v330, %v346
    %v389 = vunpack.c.l.s4 1934713408
    %v390 = vunpack.c.0.s8 %v389
    %v391 = vlaneseq
    %v392 = vshrl.u32 %v391, 7
    %v393 = vsub.s32 %v390, %v392
    %v394 = vrot.slane %v386, %v393
    %v396 = vunpack.c.l.s4 1934713408
    %v397 = vunpack.c.0.s8 %v396
    %v398 = vlaneseq
    %v399 = vshrl.u32 %v398, 7
    %v400 = vsub.s32 %v397, %v399
    %v401 = vrot.slane %v387, %v400
    %v402 = vcombine.low %v337, %v353
    %v403 = vcombine.high %v337, %v353
    %v405 = vunpack.c.l.s4 1934713408
    %v406 = vunpack.c.0.s8 %v405
    %v407 = vlaneseq
    %v408 = vshrl.u32 %v407, 7
    %v409 = vsub.s32 %v406, %v408
    %v410 = vrot.slane %v402, %v409
    %v412 = vunpack.c.l.s4 1934713408
    %v413 = vunpack.c.0.s8 %v412
    %v414 = vlaneseq
    %v415 = vshrl.u32 %v414, 7
    %v416 = vsub.s32 %v413, %v415
    %v417 = vrot.slane %v403, %v416
    %v418 = vcombine.low %v362, %v378
    %v419 = vcombine.high %v362, %v378
    %v421 = vunpack.c.l.s4 1934713408
    %v422 = vunpack.c.0.s8 %v421
    %v423 = vlaneseq
    %v424 = vshrl.u32 %v423, 7
    %v425 = vsub.s32 %v422, %v424
    %v426 = vrot.slane %v418, %v425
    %v428 = vunpack.c.l.s4 1934713408
    %v429 = vunpack.c.0.s8 %v428
    %v430 = vlaneseq
    %v431 = vshrl.u32 %v430, 7
    %v432 = vsub.s32 %v429, %v431
    %v433 = vrot.slane %v419, %v432
    %v434 = vcombine.low %v369, %v385
    %v435 = vcombine.high %v369, %v385
    %v437 = vunpack.c.l.s4 1934713408
    %v438 = vunpack.c.0.s8 %v437
    %v439 = vlaneseq
    %v440 = vshrl.u32 %v439, 7
    %v441 = vsub.s32 %v438, %v440
    %v442 = vrot.slane %v434, %v441
    %v444 = vunpack.c.l.s4 1934713408
    %v445 = vunpack.c.0.s8 %v444
    %v446 = vlaneseq
    %v447 = vshrl.u32 %v446, 7
    %v448 = vsub.s32 %v445, %v447
    %v449 = vrot.slane %v435, %v448
    %v450 = vcombine.low %v394, %v426
    %v451 = vcombine.high %v394, %v426
    %v452 = vcombine.low %v401, %v433
    %v453 = vcombine.high %v401, %v433
    %v454 = vcombine.low %v410, %v442
    %v455 = vcombine.high %v410, %v442
    %v456 = vcombine.low %v417, %v449
    %v457 = vcombine.high %v417, %v449
    %v458 = vcombine.high %v317, 0.0
    %v460 = vunpack.c.l.s4 1983009808
    %v461 = vunpack.c.0.s8 %v460
    %v462 = vlaneseq
    %v463 = vshrl.u32 %v462, 7
    %v464 = vsub.s32 %v461, %v463
    %v465 = vrot.slane %v317, %v464
    %v467 = vunpack.c.l.s4 1983009808
    %v468 = vunpack.c.0.s8 %v467
    %v469 = vlaneseq
    %v470 = vshrl.u32 %v469, 7
    %v471 = vsub.s32 %v468, %v470
    %v472 = vrot.slane %v458, %v471
    %v473 = vcombine.high %v320, 0.0
    %v475 = vunpack.c.l.s4 1983009808
    %v476 = vunpack.c.0.s8 %v475
    %v477 = vlaneseq
    %v478 = vshrl.u32 %v477, 7
    %v479 = vsub.s32 %v476, %v478
    %v480 = vrot.slane %v320, %v479
    %v482 = vunpack.c.l.s4 1983009808
    %v483 = vunpack.c.0.s8 %v482
    %v484 = vlaneseq
    %v485 = vshrl.u32 %v484, 7
    %v486 = vsub.s32 %v483, %v485
    %v487 = vrot.slane %v473, %v486
    %v488 = vcombine.low %v465, %v480
    %v489 = vcombine.high %v465, %v480
    %v491 = vunpack.c.l.s4 1934713408
    %v492 = vunpack.c.0.s8 %v491
    %v493 = vlaneseq
    %v494 = vshrl.u32 %v493, 7
    %v495 = vsub.s32 %v492, %v494
    %v496 = vrot.slane %v488, %v495
    %v498 = vunpack.c.l.s4 1934713408
    %v499 = vunpack.c.0.s8 %v498
    %v500 = vlaneseq
    %v501 = vshrl.u32 %v500, 7
    %v502 = vsub.s32 %v499, %v501
    %v503 = vrot.slane %v489, %v502
    %v504 = vcombine.low %v472, %v487
    %v505 = vcombine.high %v472, %v487
    %v507 = vunpack.c.l.s4 1934713408
    %v508 = vunpack.c.0.s8 %v507
    %v509 = vlaneseq
    %v510 = vshrl.u32 %v509, 7
    %v511 = vsub.s32 %v508, %v510
    %v512 = vrot.slane %v504, %v511
    %v514 = vunpack.c.l.s4 1934713408
    %v515 = vunpack.c.0.s8 %v514
    %v516 = vlaneseq
    %v517 = vshrl.u32 %v516, 7
    %v518 = vsub.s32 %v515, %v517
    %v519 = vrot.slane %v505, %v518
    %v520 = vcombine.high %v496, 0.0
    %v521 = vcombine.high %v503, 0.0
    %v522 = vcombine.high %v512, 0.0
    %v523 = vcombine.high %v519, 0.0
    %vm524 = vcmask 80896
    %v525 = vsel %vm524, %v450, -inf
    %526 = vmax.xlane.f32.xlu0 %v525
    %v527 = vpop.xlane.xlu0 %526
    %vm528 = vcmask 74752
    %v529 = vsel %vm528, %v496, -inf
    %530 = vmax.xlane.f32.xlu0 %v529
    %v531 = vpop.xlane.xlu0 %530
    %v532 = vsel %vm524, %v451, -inf
    %533 = vmax.xlane.f32.xlu0 %v532
    %v534 = vpop.xlane.xlu0 %533
    %v535 = vsel %vm528, %v520, -inf
    %536 = vmax.xlane.f32.xlu0 %v535
    %v537 = vpop.xlane.xlu0 %536
    %v538 = vsel %vm524, %v452, -inf
    %539 = vmax.xlane.f32.xlu0 %v538
    %v540 = vpop.xlane.xlu0 %539
    %v541 = vsel %vm528, %v503, -inf
    %542 = vmax.xlane.f32.xlu0 %v541
    %v543 = vpop.xlane.xlu0 %542
    %v544 = vsel %vm524, %v453, -inf
    %545 = vmax.xlane.f32.xlu0 %v544
    %v546 = vpop.xlane.xlu0 %545
    %v547 = vsel %vm528, %v521, -inf
    %548 = vmax.xlane.f32.xlu0 %v547
    %v549 = vpop.xlane.xlu0 %548
    %v550 = vsel %vm524, %v454, -inf
    %551 = vmax.xlane.f32.xlu0 %v550
    %v552 = vpop.xlane.xlu0 %551
    %v553 = vsel %vm528, %v512, -inf
    %554 = vmax.xlane.f32.xlu0 %v553
    %v555 = vpop.xlane.xlu0 %554
    %v556 = vsel %vm524, %v455, -inf
    %557 = vmax.xlane.f32.xlu0 %v556
    %v558 = vpop.xlane.xlu0 %557
    %v559 = vsel %vm528, %v522, -inf
    %560 = vmax.xlane.f32.xlu0 %v559
    %v561 = vpop.xlane.xlu0 %560
    %v562 = vsel %vm524, %v456, -inf
    %563 = vmax.xlane.f32.xlu0 %v562
    %v564 = vpop.xlane.xlu0 %563
    %v565 = vsel %vm528, %v519, -inf
    %566 = vmax.xlane.f32.xlu0 %v565
    %v567 = vpop.xlane.xlu0 %566
    %v568 = vsel %vm524, %v457, -inf
    %569 = vmax.xlane.f32.xlu0 %v568
    %v570 = vpop.xlane.xlu0 %569
    %v571 = vsel %vm528, %v523, -inf
    %572 = vmax.xlane.f32.xlu0 %v571
    %v573 = vpop.xlane.xlu0 %572
    %v574 = vsub.f32 %v450, %v527
    %v575 = vsub.f32 %v496, %v531
    %v576 = vsub.f32 %v451, %v534
    %v577 = vsub.f32 %v520, %v537
    %v578 = vsub.f32 %v452, %v540
    %v579 = vsub.f32 %v503, %v543
    %v580 = vsub.f32 %v453, %v546
    %v581 = vsub.f32 %v521, %v549
    %v582 = vsub.f32 %v454, %v552
    %v583 = vsub.f32 %v512, %v555
    %v584 = vsub.f32 %v455, %v558
    %v585 = vsub.f32 %v522, %v561
    %v586 = vsub.f32 %v456, %v564
    %v587 = vsub.f32 %v519, %v567
    %v588 = vsub.f32 %v457, %v570
    %v589 = vsub.f32 %v523, %v573
    %v590 = vmul.f32 %v574, 1.442695
    %v591 = vpow.pop %v590
    %v592 = vmul.f32 %v575, 1.442695
    %v593 = vpow.pop %v592
    %v594 = vmul.f32 %v576, 1.442695
    %v595 = vpow.pop %v594
    %v596 = vmul.f32 %v577, 1.442695
    %v597 = vpow.pop %v596
    %v598 = vmul.f32 %v578, 1.442695
    %v599 = vpow.pop %v598
    %v600 = vmul.f32 %v579, 1.442695
    %v601 = vpow.pop %v600
    %v602 = vmul.f32 %v580, 1.442695
    %v603 = vpow.pop %v602
    %v604 = vmul.f32 %v581, 1.442695
    %v605 = vpow.pop %v604
    %v606 = vmul.f32 %v582, 1.442695
    %v607 = vpow.pop %v606
    %v608 = vmul.f32 %v583, 1.442695
    %v609 = vpow.pop %v608
    %v610 = vmul.f32 %v584, 1.442695
    %v611 = vpow.pop %v610
    %v612 = vmul.f32 %v585, 1.442695
    %v613 = vpow.pop %v612
    %v614 = vmul.f32 %v586, 1.442695
    %v615 = vpow.pop %v614
    %v616 = vmul.f32 %v587, 1.442695
    %v617 = vpow.pop %v616
    %v618 = vmul.f32 %v588, 1.442695
    %v619 = vpow.pop %v618
    %v620 = vmul.f32 %v589, 1.442695
    %v621 = vpow.pop %v620
    %v622 = vsel %vm524, %v591, 0.0
    %623 = vadd.xlane.f32.xlu0 %v622
    %v624 = vpop.xlane.xlu0 %623
    %v625 = vsel %vm528, %v593, 0.0
    %626 = vadd.xlane.f32.xlu0 %v625
    %v627 = vpop.xlane.xlu0 %626
    %v628 = vsel %vm524, %v595, 0.0
    %629 = vadd.xlane.f32.xlu0 %v628
    %v630 = vpop.xlane.xlu0 %629
    %v631 = vsel %vm528, %v597, 0.0
    %632 = vadd.xlane.f32.xlu0 %v631
    %v633 = vpop.xlane.xlu0 %632
    %v634 = vsel %vm524, %v599, 0.0
    %635 = vadd.xlane.f32.xlu0 %v634
    %v636 = vpop.xlane.xlu0 %635
    %v637 = vsel %vm528, %v601, 0.0
    %638 = vadd.xlane.f32.xlu0 %v637
    %v639 = vpop.xlane.xlu0 %638
    %v640 = vsel %vm524, %v603, 0.0
    %641 = vadd.xlane.f32.xlu0 %v640
    %v642 = vpop.xlane.xlu0 %641
    %v643 = vsel %vm528, %v605, 0.0
    %644 = vadd.xlane.f32.xlu0 %v643
    %v645 = vpop.xlane.xlu0 %644
    %v646 = vsel %vm524, %v607, 0.0
    %647 = vadd.xlane.f32.xlu0 %v646
    %v648 = vpop.xlane.xlu0 %647
    %v649 = vsel %vm528, %v609, 0.0
    %650 = vadd.xlane.f32.xlu0 %v649
    %v651 = vpop.xlane.xlu0 %650
    %v652 = vsel %vm524, %v611, 0.0
    %653 = vadd.xlane.f32.xlu0 %v652
    %v654 = vpop.xlane.xlu0 %653
    %v655 = vsel %vm528, %v613, 0.0
    %656 = vadd.xlane.f32.xlu0 %v655
    %v657 = vpop.xlane.xlu0 %656
    %v658 = vsel %vm524, %v615, 0.0
    %659 = vadd.xlane.f32.xlu0 %v658
    %v660 = vpop.xlane.xlu0 %659
    %v661 = vsel %vm528, %v617, 0.0
    %662 = vadd.xlane.f32.xlu0 %v661
    %v663 = vpop.xlane.xlu0 %662
    %v664 = vsel %vm524, %v619, 0.0
    %665 = vadd.xlane.f32.xlu0 %v664
    %v666 = vpop.xlane.xlu0 %665
    %v667 = vsel %vm528, %v621, 0.0
    %668 = vadd.xlane.f32.xlu0 %v667
    %v669 = vpop.xlane.xlu0 %668
    %v670 = vrcp.pop %v624
    %v671 = vrcp.pop %v627
    %v672 = vrcp.pop %v630
    %v673 = vrcp.pop %v633
    %v674 = vrcp.pop %v636
    %v675 = vrcp.pop %v639
    %v676 = vrcp.pop %v642
    %v677 = vrcp.pop %v645
    %v678 = vrcp.pop %v648
    %v679 = vrcp.pop %v651
    %v680 = vrcp.pop %v654
    %v681 = vrcp.pop %v657
    %v682 = vrcp.pop %v660
    %v683 = vrcp.pop %v663
    %v684 = vrcp.pop %v666
    %v685 = vrcp.pop %v669
    %v686 = vmul.f32 %v591, %v670
    %v687 = vmul.f32 %v593, %v671
    %v688 = vmul.f32 %v595, %v672
    %v689 = vmul.f32 %v597, %v673
    %v690 = vmul.f32 %v599, %v674
    %v691 = vmul.f32 %v601, %v675
    %v692 = vmul.f32 %v603, %v676
    %v693 = vmul.f32 %v605, %v677
    %v694 = vmul.f32 %v607, %v678
    %v695 = vmul.f32 %v609, %v679
    %v696 = vmul.f32 %v611, %v680
    %v697 = vmul.f32 %v613, %v681
    %v698 = vmul.f32 %v615, %v682
    %v699 = vmul.f32 %v617, %v683
    %v700 = vmul.f32 %v619, %v684
    %v701 = vmul.f32 %v621, %v685
    %v702 = vcombine.low %v686, %v690
    %v703 = vcombine.high %v686, %v690
    %v705 = vunpack.c.l.s4 1983009808
    %v706 = vunpack.c.0.s8 %v705
    %v707 = vlaneseq
    %v708 = vshrl.u32 %v707, 7
    %v709 = vsub.s32 %v706, %v708
    %v710 = vrot.slane %v702, %v709
    %v712 = vunpack.c.l.s4 1983009808
    %v713 = vunpack.c.0.s8 %v712
    %v714 = vlaneseq
    %v715 = vshrl.u32 %v714, 7
    %v716 = vsub.s32 %v713, %v715
    %v717 = vrot.slane %v703, %v716
    %v718 = vcombine.low %v688, %v692
    %v719 = vcombine.high %v688, %v692
    %v721 = vunpack.c.l.s4 1983009808
    %v722 = vunpack.c.0.s8 %v721
    %v723 = vlaneseq
    %v724 = vshrl.u32 %v723, 7
    %v725 = vsub.s32 %v722, %v724
    %v726 = vrot.slane %v718, %v725
    %v728 = vunpack.c.l.s4 1983009808
    %v729 = vunpack.c.0.s8 %v728
    %v730 = vlaneseq
    %v731 = vshrl.u32 %v730, 7
    %v732 = vsub.s32 %v729, %v731
    %v733 = vrot.slane %v719, %v732
    %v734 = vcombine.low %v694, %v698
    %v735 = vcombine.high %v694, %v698
    %v737 = vunpack.c.l.s4 1983009808
    %v738 = vunpack.c.0.s8 %v737
    %v739 = vlaneseq
    %v740 = vshrl.u32 %v739, 7
    %v741 = vsub.s32 %v738, %v740
    %v742 = vrot.slane %v734, %v741
    %v744 = vunpack.c.l.s4 1983009808
    %v745 = vunpack.c.0.s8 %v744
    %v746 = vlaneseq
    %v747 = vshrl.u32 %v746, 7
    %v748 = vsub.s32 %v745, %v747
    %v749 = vrot.slane %v735, %v748
    %v750 = vcombine.low %v696, %v700
    %v751 = vcombine.high %v696, %v700
    %v753 = vunpack.c.l.s4 1983009808
    %v754 = vunpack.c.0.s8 %v753
    %v755 = vlaneseq
    %v756 = vshrl.u32 %v755, 7
    %v757 = vsub.s32 %v754, %v756
    %v758 = vrot.slane %v750, %v757
    %v760 = vunpack.c.l.s4 1983009808
    %v761 = vunpack.c.0.s8 %v760
    %v762 = vlaneseq
    %v763 = vshrl.u32 %v762, 7
    %v764 = vsub.s32 %v761, %v763
    %v765 = vrot.slane %v751, %v764
    %v766 = vcombine.low %v710, %v726
    %v767 = vcombine.high %v710, %v726
    %v769 = vunpack.c.l.s4 1934713408
    %v770 = vunpack.c.0.s8 %v769
    %v771 = vlaneseq
    %v772 = vshrl.u32 %v771, 7
    %v773 = vsub.s32 %v770, %v772
    %v774 = vrot.slane %v766, %v773
    %v776 = vunpack.c.l.s4 1934713408
    %v777 = vunpack.c.0.s8 %v776
    %v778 = vlaneseq
    %v779 = vshrl.u32 %v778, 7
    %v780 = vsub.s32 %v777, %v779
    %v781 = vrot.slane %v767, %v780
    %v782 = vcombine.low %v717, %v733
    %v783 = vcombine.high %v717, %v733
    %v785 = vunpack.c.l.s4 1934713408
    %v786 = vunpack.c.0.s8 %v785
    %v787 = vlaneseq
    %v788 = vshrl.u32 %v787, 7
    %v789 = vsub.s32 %v786, %v788
    %v790 = vrot.slane %v782, %v789
    %v792 = vunpack.c.l.s4 1934713408
    %v793 = vunpack.c.0.s8 %v792
    %v794 = vlaneseq
    %v795 = vshrl.u32 %v794, 7
    %v796 = vsub.s32 %v793, %v795
    %v797 = vrot.slane %v783, %v796
    %v798 = vcombine.low %v742, %v758
    %v799 = vcombine.high %v742, %v758
    %v801 = vunpack.c.l.s4 1934713408
    %v802 = vunpack.c.0.s8 %v801
    %v803 = vlaneseq
    %v804 = vshrl.u32 %v803, 7
    %v805 = vsub.s32 %v802, %v804
    %v806 = vrot.slane %v798, %v805
    %v808 = vunpack.c.l.s4 1934713408
    %v809 = vunpack.c.0.s8 %v808
    %v810 = vlaneseq
    %v811 = vshrl.u32 %v810, 7
    %v812 = vsub.s32 %v809, %v811
    %v813 = vrot.slane %v799, %v812
    %v814 = vcombine.low %v749, %v765
    %v815 = vcombine.high %v749, %v765
    %v817 = vunpack.c.l.s4 1934713408
    %v818 = vunpack.c.0.s8 %v817
    %v819 = vlaneseq
    %v820 = vshrl.u32 %v819, 7
    %v821 = vsub.s32 %v818, %v820
    %v822 = vrot.slane %v814, %v821
    %v824 = vunpack.c.l.s4 1934713408
    %v825 = vunpack.c.0.s8 %v824
    %v826 = vlaneseq
    %v827 = vshrl.u32 %v826, 7
    %v828 = vsub.s32 %v825, %v827
    %v829 = vrot.slane %v815, %v828
    %v830 = vcombine.low %v774, %v806
    %v831 = vcombine.high %v774, %v806
    %v832 = vcombine.low %v781, %v813
    %v833 = vcombine.high %v781, %v813
    %v834 = vcombine.low %v790, %v822
    %v835 = vcombine.high %v790, %v822
    %v836 = vcombine.low %v797, %v829
    %v837 = vcombine.high %v797, %v829
    %v838 = vcombine.low %v687, %v691
    %v840 = vunpack.c.l.s4 1983009808
    %v841 = vunpack.c.0.s8 %v840
    %v842 = vlaneseq
    %v843 = vshrl.u32 %v842, 7
    %v844 = vsub.s32 %v841, %v843
    %v845 = vrot.slane %v838, %v844
    %v846 = vcombine.low %v689, %v693
    %v848 = vunpack.c.l.s4 1983009808
    %v849 = vunpack.c.0.s8 %v848
    %v850 = vlaneseq
    %v851 = vshrl.u32 %v850, 7
    %v852 = vsub.s32 %v849, %v851
    %v853 = vrot.slane %v846, %v852
    %v854 = vcombine.low %v695, %v699
    %v856 = vunpack.c.l.s4 1983009808
    %v857 = vunpack.c.0.s8 %v856
    %v858 = vlaneseq
    %v859 = vshrl.u32 %v858, 7
    %v860 = vsub.s32 %v857, %v859
    %v861 = vrot.slane %v854, %v860
    %v862 = vcombine.low %v697, %v701
    %v864 = vunpack.c.l.s4 1983009808
    %v865 = vunpack.c.0.s8 %v864
    %v866 = vlaneseq
    %v867 = vshrl.u32 %v866, 7
    %v868 = vsub.s32 %v865, %v867
    %v869 = vrot.slane %v862, %v868
    %v870 = vcombine.low %v845, %v853
    %v872 = vunpack.c.l.s4 1934713408
    %v873 = vunpack.c.0.s8 %v872
    %v874 = vlaneseq
    %v875 = vshrl.u32 %v874, 7
    %v876 = vsub.s32 %v873, %v875
    %v877 = vrot.slane %v870, %v876
    %v878 = vcombine.low %v861, %v869
    %v880 = vunpack.c.l.s4 1934713408
    %v881 = vunpack.c.0.s8 %v880
    %v882 = vlaneseq
    %v883 = vshrl.u32 %v882, 7
    %v884 = vsub.s32 %v881, %v883
    %v885 = vrot.slane %v878, %v884
    %v886 = vcombine.low %v877, %v885
    %v887 = vcombine.high %v877, %v885
    %889 = vrot.lane.b32.xlu0 %v831, 10
    %v890 = vpop.permute.xlu0 %889
    %893 = vrot.lane.b32.xlu0 %v832, 20
    %v894 = vpop.permute.xlu0 %893
    %897 = vrot.lane.b32.xlu0 %v833, 30
    %v898 = vpop.permute.xlu0 %897
    %901 = vrot.lane.b32.xlu0 %v834, 40
    %v902 = vpop.permute.xlu0 %901
    %905 = vrot.lane.b32.xlu0 %v835, 50
    %v906 = vpop.permute.xlu0 %905
    %909 = vrot.lane.b32.xlu0 %v836, 60
    %v910 = vpop.permute.xlu0 %909
    %913 = vrot.lane.b32.xlu0 %v837, 70
    %v914 = vpop.permute.xlu0 %913
    %917 = vrot.lane.b32.xlu0 %v886, 80
    %v918 = vpop.permute.xlu0 %917
    %921 = vrot.lane.b32.xlu0 %v887, 90
    %v922 = vpop.permute.xlu0 %921
    %v924 = vsel %vm524, %v830, %v890
    %vm925 = vcmask 162816
    %v926 = vsel %vm925, %v924, %v894
    %vm927 = vcmask 244736
    %v928 = vsel %vm927, %v926, %v898
    %vm929 = vcmask 326656
    %v930 = vsel %vm929, %v928, %v902
    %vm931 = vcmask 408576
    %v932 = vsel %vm931, %v930, %v906
    %vm933 = vcmask 490496
    %v934 = vsel %vm933, %v932, %v910
    %vm935 = vcmask 572416
    %v936 = vsel %vm935, %v934, %v914
    %vm937 = vcmask 654336
    %v938 = vsel %vm937, %v936, %v918
    %vm939 = vcmask 736256
    %v940 = vsel %vm939, %v938, %v922
    %vm941 = vcmask 818176
    %v942 = vsel %vm941, %v940, 0.0
    %943 = vst [vmem:[#allocation8] sm:$0xff] %v942
    // Predicated region
    $region34: #{tpu_custom_call.1} parent=1 // pred_check
      _
    $region35: #{tpu_custom_call.1} parent=1 // pred_check_branch
      %945 = sbr.rel (0) target = $region37
    $region36: #{tpu_custom_call.1} parent=1 // pred_region
      %s947 = ssub.s32 128, 128
      %948 = vsyncadd [#allocation4], %s947
      %s950 = sshll.u32 [#allocation8], 4
      %s951 = int_to_ptr.vmem [resolvable:$true] %s950
      %953 = dma.vmem_to_hbm [thread:$0]  %s951, 128, %s5, [#allocation4]
    $region37: #{tpu_custom_call.1} parent=1 // pred_fallthru
      _
    // Predicated region
    $region38: #{tpu_custom_call.1} parent=1 // pred_check
      _
    $region39: #{tpu_custom_call.1} parent=1 // pred_check_branch
      %955 = sbr.rel (0) target = $region41
    $region40: #{tpu_custom_call.1} parent=1 // pred_region
      %956 = dma.done [#allocation4], 128
    $region41: #{tpu_custom_call.1} parent=1 // pred_fallthru
      _
    %957 = vsyncpa [#allocation3], 1
    %958 = vsyncpa [#allocation6], 1
    %959 = vsyncpa [#allocation4], 1

</llo_original>
